<compile_context>
chip_gen: v5e
topology: v5e:2x2
jax: 0.10.0
libtpu: 0.0.40
codegen_flags: <defaults>
</compile_context>

<pallas_src>
import math

import jax
import jax.numpy as jnp
from jax.experimental import pallas as pl
from jax.experimental.pallas import tpu as pltpu


_LANE = 128
_SUBLANE = 8
_SMALL_FALLBACK_BYTES = 1 << 20          # below ~1 MiB a fused XLA add wins
_VMEM_LIMIT_CAP = 32 * 1024 * 1024       # never claim a full v7x core's 64 MiB


def make_positional_encoding(d_model: int, max_len: int = 200,
                             dtype=jnp.float32) -> jnp.ndarray:
    """Builds the (1, max_len, d_model) sin/cos PE buffer, pre-cast to `dtype`."""
    # The PyTorch original implicitly assumes an even d_model.
    assert d_model % 2 == 0, "PositionalEncoding requires an even d_model"
    position = jnp.arange(max_len, dtype=jnp.float32)[:, None]            # (max_len, 1)
    div_term = jnp.exp(
        jnp.arange(0, d_model, 2, dtype=jnp.float32)
        * (-math.log(10000.0) / d_model)
    )                                                                      # (d_model/2,)
    angles = position * div_term                                           # (max_len, d_model/2)
    pe = jnp.zeros((max_len, d_model), dtype=jnp.float32)
    pe = pe.at[:, 0::2].set(jnp.sin(angles))
    pe = pe.at[:, 1::2].set(jnp.cos(angles))
    return pe[None, :, :].astype(dtype)                                   # (1, max_len, d_model)


def _pe_add_kernel(x_ref, pe_ref, o_ref):
    # x_ref / o_ref : (b_tile, s_tile, D')   current activation block
    # pe_ref        : (s_tile, D')           matching PE rows, broadcast over batch
    o_ref[...] = x_ref[...] + pe_ref[...][None, :, :]


def _round_up(n: int, m: int) -> int:
    return ((n + m - 1) // m) * m


def _target_x_block_bytes() -> int:
    """Per-step x-slab target: bigger on v7x-class chips (3.2 TB/s HBM, 64 MiB VMEM)."""
    try:
        info = pltpu.get_tpu_info()
        vmem = int(getattr(info, "vmem_capacity_bytes", 0) or 0)
        if 0 < vmem <= 64 * 1024 * 1024:
            return 4 * 1024 * 1024           # v7x-class
    except Exception:
        pass
    return 3 * 1024 * 1024                   # v5e / v6e (keeps padded WS well under limits)


def positional_encoding_forward(x: jnp.ndarray, pe: jnp.ndarray,
                                *, force_pallas: bool = False) -> jnp.ndarray:
    """x: (B, S, D); pe: (1, max_len, D). Returns x + pe[:, :S, :] (dtype of x)."""
    B, S, D = x.shape
    max_len = pe.shape[1]
    assert S <= max_len, f"sequence length {S} exceeds max_len {max_len}"
    assert pe.shape[0] == 1 and pe.shape[2] == D, "pe shape mismatch"

    if pe.dtype != x.dtype:
        pe = pe.astype(x.dtype)              # no-op when the table was built in model dtype

    itemsize = jnp.dtype(x.dtype).itemsize

    # Tiny inputs: skip the Pallas dispatch entirely, XLA's fused add is at least as fast.
    if (not force_pallas) and (x.size * itemsize < _SMALL_FALLBACK_BYTES):
        return x + pe[:, :S, :]

    # ---- Lane folding: group f consecutive positions so the lane dim is a
    # multiple of 128 (unmasked full-lane vst) whenever the shapes allow it.
    g = _LANE // math.gcd(D, _LANE)
    f = g if (g > 1 and S % g == 0 and max_len % g == 0) else 1
    S2, D2 = S // f, D * f

    x2 = x.reshape(B, S2, D2)

    # ---- Sequence tile (sublane axis): multiple of 8 whenever S2 >= 8.
    target = _target_x_block_bytes()
    padD = _round_up(D2, _LANE)
    row_bytes = padD * itemsize
    if S2 >= _SUBLANE:
        s_by_budget = max(_SUBLANE, (target // row_bytes) // _SUBLANE * _SUBLANE)
        s_tile = max(_SUBLANE, min((S2 // _SUBLANE) * _SUBLANE, s_by_budget))
        # Full PE table, reshape only (no per-call slice).  A partial last seq-tile
        # reads valid-but-unused PE rows; the matching x rows are masked on store.
        pe2 = pe.reshape(max_len // f, D2)
    else:
        # Very short sequences: the block spans the whole sequence, so PE's first
        # dim must equal it for a legal BlockSpec -> slice the (tiny) table.
        s_tile = S2
        pe2 = pe[0, :S, :].reshape(S2, D2)

    # ---- Batch tile: bound the padded block by the slab target (robust for large B).
    per_item_bytes = _round_up(s_tile, _SUBLANE) * row_bytes      # padded bytes / batch item / tile
    b_tile = int(max(1, min(B, target // per_item_bytes)))
    num_s = pl.cdiv(S2, s_tile)
    num_b = pl.cdiv(B, b_tile)

    # v7x megacore: avoid a single-step grid for non-trivial sizes (2 TCs idle otherwise).
    if num_s * num_b == 1 and B > 1 and b_tile * per_item_bytes > (1 << 20):
        b_tile = (B + 1) // 2
        num_b = pl.cdiv(B, b_tile)

    # ---- VMEM accounting on the PADDED footprint: x + out + pe, each double-buffered.
    x_block_bytes = b_tile * per_item_bytes
    pe_block_bytes = per_item_bytes
    working_set = 2 * (2 * x_block_bytes + pe_block_bytes)
    vmem_limit = int(min(max(working_set * 3 // 2, 4 * 1024 * 1024), _VMEM_LIMIT_CAP))

    out2 = pl.pallas_call(
        _pe_add_kernel,
        out_shape=jax.ShapeDtypeStruct((B, S2, D2), x.dtype),
        grid_spec=pltpu.PrefetchScalarGridSpec(
            num_scalar_prefetch=0,
            # batch innermost: the PE block index is unchanged across it, so the
            # pipeline does not re-fetch PE while sweeping the batch.
            grid=(num_s, num_b),
            in_specs=[
                pl.BlockSpec((b_tile, s_tile, D2), lambda s, b: (b, s, 0)),
                pl.BlockSpec((s_tile, D2), lambda s, b: (s, 0)),
            ],
            out_specs=pl.BlockSpec((b_tile, s_tile, D2), lambda s, b: (b, s, 0)),
        ),
        compiler_params=pltpu.CompilerParams(
            dimension_semantics=("parallel", "parallel"),
            vmem_limit_bytes=vmem_limit,
        ),
    )(x2, pe2)

    return out2.reshape(B, S, D)
    # TODO(synk): this op is strictly HBM-roofline-bound; the remaining large win is
    # fusing the add into an adjacent producer/consumer (embedding scale, dropout,
    # first attention input prep) to save a full activation round trip to HBM.


if __name__ == "__main__":
    max_len = 200
    key = jax.random.PRNGKey(0)

    # 1) Module's demo shape (exercises the short-sequence / lane-folded branch).
    B, S, D = 2, 8, 32
    pe = make_positional_encoding(D, max_len)
    print("PE DIMENSION = ", pe.shape)
    x = jax.random.normal(key, (B, S, D), dtype=jnp.float32)
    out = jax.block_until_ready(positional_encoding_forward(x, pe, force_pallas=True))
    ref = x + pe[:, :S, :]
    assert out.shape == (B, S, D)
    assert jnp.allclose(out, ref, atol=1e-6, rtol=1e-6), "mismatch vs reference (demo shape)"

    # 2) Sublane-dense branch (S' >= 8, D already a multiple of 128, single tile).
    B2, S2_, D2_ = 4, 64, 256
    pe_b = make_positional_encoding(D2_, max_len)
    x_b = jax.random.normal(jax.random.PRNGKey(0), (B2, S2_, D2_), dtype=jnp.float32)
    out_b = jax.block_until_ready(positional_encoding_forward(x_b, pe_b, force_pallas=True))
    ref_b = x_b + pe_b[:, :S2_, :]
    assert jnp.allclose(out_b, ref_b, atol=1e-6, rtol=1e-6), "mismatch vs reference (dense shape)"

    # 3) Multi-tile sequence grid with a partial last tile (S not a multiple of 8).
    B3, S3_, D3_ = 2, 100, 256
    x_c = jax.random.normal(jax.random.PRNGKey(0), (B3, S3_, D3_), dtype=jnp.float32)
    out_c = jax.block_until_ready(positional_encoding_forward(x_c, pe_b, force_pallas=True))
    ref_c = x_c + pe_b[:, :S3_, :]
    assert jnp.allclose(out_c, ref_c, atol=1e-6, rtol=1e-6), "mismatch vs reference (partial tile)"

    print("KERNEL_OK")
</pallas_src>

<mosaic_0001>
module attributes {stable_mosaic.version = 11 : i64} {
  func.func @_pe_add_kernel(%arg0: i32, %arg1: i32, %arg2: memref<2x2x128xf32, #tpu.memory_space<vmem>>, %arg3: memref<2x128xf32, #tpu.memory_space<vmem>>, %arg4: memref<2x2x128xf32, #tpu.memory_space<vmem>>) attributes {dimension_semantics = [#tpu.dimension_semantics<parallel>, #tpu.dimension_semantics<parallel>], iteration_bounds = array<i64: 1, 1>, scalar_prefetch = 0 : i64, scratch_operands = 0 : i64, tpu.core_type = #tpu.core_type<tc>, window_params = [{transform_indices = @transform_0, window_bounds = array<i64: 2, 2, 128>}, {transform_indices = @transform_1, window_bounds = array<i64: 2, 128>}, {transform_indices = @transform_2, window_bounds = array<i64: 2, 2, 128>}]} {
    %c0 = arith.constant 0 : index
    %c0_0 = arith.constant 0 : index
    %c0_1 = arith.constant 0 : index
    %0 = vector.load %arg2[%c0, %c0_0, %c0_1] : memref<2x2x128xf32, #tpu.memory_space<vmem>>, vector<2x2x128xf32>
    %c0_2 = arith.constant 0 : index
    %c0_3 = arith.constant 0 : index
    %1 = vector.load %arg3[%c0_2, %c0_3] : memref<2x128xf32, #tpu.memory_space<vmem>>, vector<2x128xf32>
    %2 = vector.shape_cast %1 : vector<2x128xf32> to vector<1x2x128xf32>
    %3 = vector.broadcast %2 : vector<1x2x128xf32> to vector<2x2x128xf32>
    %4 = arith.addf %0, %3 : vector<2x2x128xf32>
    %c0_4 = arith.constant 0 : index
    %c0_5 = arith.constant 0 : index
    %c0_6 = arith.constant 0 : index
    %5 = vector.load %arg4[%c0_4, %c0_5, %c0_6] : memref<2x2x128xf32, #tpu.memory_space<vmem>>, vector<2x2x128xf32>
    tpu.vector_store %arg4[%c0_4, %c0_5, %c0_6], %4 {strides = array<i32>} : memref<2x2x128xf32, #tpu.memory_space<vmem>>, vector<2x2x128xf32>,
    return
  }
  func.func @transform_0(%arg0: i32, %arg1: i32) -> (i32, i32, i32) {
    %c0_i32 = arith.constant 0 : i32
    %c0_i32_0 = arith.constant 0 : i32
    return %arg1, %arg0, %c0_i32 : i32, i32, i32
  }
  func.func @transform_1(%arg0: i32, %arg1: i32) -> (i32, i32) {
    %c0_i32 = arith.constant 0 : i32
    %c0_i32_0 = arith.constant 0 : i32
    return %arg0, %c0_i32 : i32, i32
  }
  func.func @transform_2(%arg0: i32, %arg1: i32) -> (i32, i32, i32) {
    %c0_i32 = arith.constant 0 : i32
    %c0_i32_0 = arith.constant 0 : i32
    return %arg1, %arg0, %c0_i32 : i32, i32, i32
  }
}

</mosaic_0001>

<llo_original>
// kernel: tpu_custom_call.1
$region0: #{tpu_custom_call.1}
  #allocation0 [shape = 'u32[]', space=smem, size = 0x4, offset = 0x4, fixed_abs, tag = 'smem constant byte address 0x4 - core index']
  #allocation1 [shape = 'u32[72,128]{1,0:T(1,128)}', space=vmem, size = 0x9000, scoped, tag = 'internal scratch']
  %s0 = inlined_call_operand.hbm [shape: f32[2,2,128], index: 0, kind: input, shape index: {}]
  %s1 = inlined_call_operand.hbm [shape: f32[2,128], index: 1, kind: input, shape index: {}]
  %s2 = inlined_call_operand.hbm [shape: f32[2,2,128], index: 2, kind: output, shape index: {}]
  %s3 = sld [smem:[#allocation0]]
  $region26: #{tpu_custom_call.1} parent=0
    _
  %s5 = ssub.s32 1, %s3
  %s6 = scalar_select 0, %s5, %s3
  $region1: #{tpu_custom_call.1} parent=0
    #allocation2 [shape = 'u8[2048]{0}', space=vmem, size = 0x800, scoped, tag = 'input window, operand 0, single buffered']
    #allocation3 [shape = 's32[1]{0}', space=sflag, size = 0x4, scoped, tag = 'scoped memory for tpu_custom_call.1']
    #allocation4 [shape = 's32[1]{0}', space=sflag, size = 0x4, scoped, tag = 'scoped memory for tpu_custom_call.1']
    #allocation5 [shape = 'u8[1024]{0}', space=vmem, size = 0x400, scoped, tag = 'input window, operand 1, single buffered']
    #allocation6 [shape = 's32[1]{0}', space=sflag, size = 0x4, scoped, tag = 'scoped memory for tpu_custom_call.1']
    #allocation7 [shape = 'u8[2048]{0}', space=vmem, size = 0x800, scoped, tag = 'output window, operand 0, single buffered']
    %7 = vsyncpa [#allocation3], 0
    %8 = vsyncpa [#allocation6], 0
    %9 = vsyncpa [#allocation4], 0
    // Predicated region
    $region2: #{tpu_custom_call.1} parent=1 // pred_check
      _
    $region3: #{tpu_custom_call.1} parent=1 // pred_check_branch
      %11 = sbr.rel (0) target = $region5
    $region4: #{tpu_custom_call.1} parent=1 // pred_region
      %13 = vsyncadd [#allocation3], 0
      %s14 = sshll.u32 %s0, 4
      %s15 = int_to_ptr.hbm [resolvable:$true] %s14
      %s16 = sshll.u32 [#allocation2], 4
      %s17 = int_to_ptr.vmem [resolvable:$true] %s16
      %22 = dma.hbm_to_vmem [thread:$0]  %s15, 64, %s17, [#allocation3], 32, 32, 2
    $region5: #{tpu_custom_call.1} parent=1 // pred_fallthru
      _
    // Predicated region
    $region6: #{tpu_custom_call.1} parent=1 // pred_check
      _
    $region7: #{tpu_custom_call.1} parent=1 // pred_check_branch
      %24 = sbr.rel (0) target = $region9
    $region8: #{tpu_custom_call.1} parent=1 // pred_region
      %26 = vsyncadd [#allocation6], 0
      %s28 = sshll.u32 %s1, 4
      %s29 = int_to_ptr.hbm [resolvable:$true] %s28
      %s30 = sshll.u32 [#allocation5], 4
      %s31 = int_to_ptr.vmem [resolvable:$true] %s30
      %33 = dma.hbm_to_vmem [thread:$0]  %s29, 32, %s31, [#allocation6]
    $region9: #{tpu_custom_call.1} parent=1 // pred_fallthru
      _
    // Predicated region
    $region10: #{tpu_custom_call.1} parent=1 // pred_check
      _
    $region11: #{tpu_custom_call.1} parent=1 // pred_check_branch
      %35 = sbr.rel (0) target = $region13
    $region12: #{tpu_custom_call.1} parent=1 // pred_region
      %37 = dma.done [#allocation3], 64
    $region13: #{tpu_custom_call.1} parent=1 // pred_fallthru
      _
    // Predicated region
    $region14: #{tpu_custom_call.1} parent=1 // pred_check
      _
    $region15: #{tpu_custom_call.1} parent=1 // pred_check_branch
      %39 = sbr.rel (0) target = $region17
    $region16: #{tpu_custom_call.1} parent=1 // pred_region
      %41 = dma.done [#allocation6], 32
    $region17: #{tpu_custom_call.1} parent=1 // pred_fallthru
      _
    %v42 = vld [vmem:[#allocation2] sm:$0x3]
    %v43 = vld [vmem:[#allocation2 + $0x2] sm:$0x3]
    %v44 = vld [vmem:[#allocation5] sm:$0x3]
    %v45 = vadd.f32 %v42, %v44
    %v46 = vadd.f32 %v43, %v44
    %47 = vst [vmem:[#allocation7] sm:$0x3] %v45
    %48 = vst [vmem:[#allocation7 + $0x2] sm:$0x3] %v46
    // Predicated region
    $region18: #{tpu_custom_call.1} parent=1 // pred_check
      _
    $region19: #{tpu_custom_call.1} parent=1 // pred_check_branch
      %50 = sbr.rel (0) target = $region21
    $region20: #{tpu_custom_call.1} parent=1 // pred_region
      %52 = vsyncadd [#allocation4], 0
      %s53 = sshll.u32 [#allocation7], 4
      %s54 = int_to_ptr.vmem [resolvable:$true] %s53
      %s55 = sshll.u32 %s2, 4
      %s56 = int_to_ptr.hbm [resolvable:$true] %s55
      %61 = dma.vmem_to_hbm [thread:$0]  %s54, 64, %s56, [#allocation4], 32, 32, 2
    $region21: #{tpu_custom_call.1} parent=1 // pred_fallthru
      _
    // Predicated region
    $region22: #{tpu_custom_call.1} parent=1 // pred_check
      _
    $region23: #{tpu_custom_call.1} parent=1 // pred_check_branch
      %63 = sbr.rel (0) target = $region25
    $region24: #{tpu_custom_call.1} parent=1 // pred_region
      %65 = dma.done [#allocation4], 64
    $region25: #{tpu_custom_call.1} parent=1 // pred_fallthru
      _
    %66 = vsyncpa [#allocation3], 1
    %67 = vsyncpa [#allocation6], 1
    %68 = vsyncpa [#allocation4], 1

</llo_original>
